<compile_context>
chip_gen: v5e
topology: v5e:2x2
jax: 0.10.0
libtpu: 0.0.40
codegen_flags: <defaults>
</compile_context>

<pallas_src>
import functools

import jax
import jax.numpy as jnp
from jax.experimental import pallas as pl
from jax.experimental.pallas import tpu as pltpu

BN_EPS = 1e-5
LANE = 128


def _round_up(n, m):
    return ((n + m - 1) // m) * m


def _dls_kernel(num_classes, padded_classes, factor):
    """Kernel closure with static real/padded class counts and factor."""
    need_mask = num_classes != padded_classes

    def kernel(x_ref, y_ref, w1_ref, w2_hbm_ref, o_ref, w2_vmem, w2_sem):
        # Kick off the w2 HBM -> VMEM copy immediately; it overlaps with the
        # whole of stage 1 (matmul + BN + custom) and is waited on just before
        # the stage-2 dot.
        w2_copy = pltpu.make_async_copy(w2_hbm_ref, w2_vmem, w2_sem)
        w2_copy.start()

        x = x_ref[...]                       # (B, CP) f32, zero-padded lanes
        y = y_ref[...]                       # (B, CP) f32, exact one-hot + zero pad
        cp = x.shape[1]

        # Bool lane-validity mask, only materialized when padding exists.
        if need_mask:
            lane_valid = (jax.lax.broadcasted_iota(jnp.int32, (1, cp), 1)
                          < num_classes)
        else:
            lane_valid = None

        # Hot-lane selector (y is an exact one-hot; padded lanes are 0 -> not hot).
        is_hot = y != 0.0

        def batchnorm(h):
            # BatchNorm1d(track_running_stats=False): batch stats, biased var,
            # gamma=1, beta=0.  Two-pass form kept for exact numerical parity
            # with the f32 reference at demo size (one-pass sum/sumsq only pays
            # off at large B).  rsqrt rides the EUP slot.
            mean = jnp.mean(h, axis=0, keepdims=True)
            var = jnp.mean((h - mean) ** 2, axis=0, keepdims=True)
            return (h - mean) * jax.lax.rsqrt(var + BN_EPS)

        def custom_add(h):
            # forward() computes custom() then adds the two outputs:
            #   y_inv * h + y * (factor * max|h|)
            # which, for exact one-hot y, is a single select.
            if lane_valid is not None:
                # Padded lanes are already exactly 0 (zero-padded weights),
                # but guard the lane-max anyway -- one cheap vselect.
                h = jnp.where(lane_valid, h, 0.0)
            max_value = jnp.max(jnp.abs(h), axis=1, keepdims=True) * factor
            return jnp.where(is_hot, max_value, h)

        # ---- stage 1: linear1 (bias dropped: cancelled by BN) -> bn1 -> custom ----
        h = jnp.dot(x.astype(w1_ref.dtype), w1_ref[...],
                    preferred_element_type=jnp.float32)
        h = custom_add(batchnorm(h))

        # ---- stage 2: linear2 -> bn2 -> custom ----
        w2_copy.wait()
        h = jnp.dot(h.astype(w2_vmem.dtype), w2_vmem[...],
                    preferred_element_type=jnp.float32)
        h = custom_add(batchnorm(h))

        o_ref[...] = h.astype(o_ref.dtype)

    return kernel


def prepare_dls_params(w1, w2, *, matmul_dtype=jnp.float32):
    """One-time parameter preprocessing (hoisted out of the forward hot path).

    Transposes PyTorch-layout Linear weights (out, in) -> (in, out), zero-pads the
    class dim up to a multiple of 128 lanes, and casts to `matmul_dtype`
    (use jnp.bfloat16 for large num_classes; accumulation stays f32 in-kernel).
    Biases are intentionally not part of the prepared params: train-mode BN with
    gamma=1/beta=0 cancels any constant per-column bias exactly.
    """
    w1 = jnp.asarray(w1, jnp.float32)
    C = w1.shape[0]
    CP = max(LANE, _round_up(C, LANE))
    pad_c = CP - C

    def pad_w(w):
        wt = jnp.asarray(w, jnp.float32).T                       # (in, out)
        return jnp.pad(wt, ((0, pad_c), (0, pad_c))).astype(matmul_dtype)

    return {
        "w1": pad_w(w1), "w2": pad_w(w2),
        "num_classes": C, "padded_classes": CP,
    }


@functools.partial(
    jax.jit, static_argnames=("num_classes", "padded_classes", "factor"))
def _dls_forward(x, y, w1, w2, *, num_classes, padded_classes, factor):
    C, CP = num_classes, padded_classes
    B = x.shape[0]
    pad_c = CP - C

    # Activation padding fused into the same XLA program as the kernel call.
    # Negligible HBM traffic at demo size; see TODO(synk) above for large B.
    x_pad = jnp.pad(x.astype(jnp.float32), ((0, 0), (0, pad_c)))
    y_pad = jnp.pad(y.astype(jnp.float32), ((0, 0), (0, pad_c)))

    full2d = lambda shape: pl.BlockSpec(shape, lambda: (0, 0))

    w_itemsize = jnp.dtype(w1.dtype).itemsize
    # grid=() -> no pipelining / no double-buffering.  Resident in VMEM:
    # x, y, out (f32) + w1 tile (auto-DMA) + w2 scratch (manual DMA) + headroom.
    vmem_bytes = (3 * B * CP * 4
                  + 2 * CP * CP * w_itemsize
                  + (2 << 20))
    vmem_limit = min(max(vmem_bytes, 4 << 20), 100 << 20)

    cost = pl.CostEstimate(
        flops=int(4 * B * CP * CP),                  # two (B,CP)x(CP,CP) matmuls
        transcendentals=int(2 * CP),                 # rsqrt per BN column
        bytes_accessed=int(2 * CP * CP * w_itemsize + 3 * B * CP * 4),
    )

    out_pad = pl.pallas_call(
        _dls_kernel(C, CP, float(factor)),
        out_shape=jax.ShapeDtypeStruct((B, CP), jnp.float32),
        grid_spec=pltpu.PrefetchScalarGridSpec(
            num_scalar_prefetch=0,
            grid=(),
            in_specs=[
                full2d((B, CP)),                     # x (padded)
                full2d((B, CP)),                     # y (padded one-hot)
                full2d((CP, CP)),                    # w1^T (padded, auto-DMA)
                pl.BlockSpec(memory_space=pl.ANY),   # w2^T stays in HBM; manual DMA
            ],
            out_specs=full2d((B, CP)),
            scratch_shapes=[
                pltpu.VMEM((CP, CP), w1.dtype),      # w2 landing buffer
                pltpu.SemaphoreType.DMA(()),         # w2 copy completion
            ],
        ),
        compiler_params=pltpu.CompilerParams(vmem_limit_bytes=int(vmem_limit)),
        cost_estimate=cost,
    )(x_pad, y_pad, w1, w2)

    return out_pad[:, :C]


def dls_block_forward(x, y, params, *, factor=3):
    """x, y: (B, num_classes).  `params` from prepare_dls_params()."""
    return _dls_forward(
        x, y, params["w1"], params["w2"],
        num_classes=params["num_classes"],
        padded_classes=params["padded_classes"],
        factor=factor,
    )


def dls_block_reference(x, y, w1, b1, w2, b2, *, factor=3):
    """Pure-JAX reference mirroring the PyTorch forward (train-mode BN),
    including the bias adds the kernel drops (BN cancels them exactly)."""

    def bn(h):
        mean = jnp.mean(h, axis=0, keepdims=True)
        var = jnp.mean((h - mean) ** 2, axis=0, keepdims=True)
        return (h - mean) / jnp.sqrt(var + BN_EPS)

    def custom(h):
        mv = jnp.max(jnp.abs(h), axis=1, keepdims=True) * factor
        y_inv = jnp.where(y == 0.0, 1.0, 0.0)
        return y_inv * h + y * mv

    h = x @ w1.T + b1
    h = custom(bn(h))
    h = h @ w2.T + b2
    h = custom(bn(h))
    return h


if __name__ == "__main__":
    key = jax.random.PRNGKey(0)
    B, C = 8, 16  # batch matches the 8-sublane vreg height; C padded to 128 lanes
    factor = 3

    k_x, k_y, k_w1, k_w2 = jax.random.split(key, 4)

    x = jax.random.normal(k_x, (B, C), dtype=jnp.float32)
    labels = jax.random.randint(k_y, (B,), 0, C)
    y = jax.nn.one_hot(labels, C, dtype=jnp.float32)  # exact one-hot (required)

    # _init_weights: Linear weight ~ N(0, 1), bias = 0; BN gamma=1, beta=0.
    w1 = jax.random.normal(k_w1, (C, C), dtype=jnp.float32)
    b1 = jnp.zeros((C,), dtype=jnp.float32)
    w2 = jax.random.normal(k_w2, (C, C), dtype=jnp.float32)
    b2 = jnp.zeros((C,), dtype=jnp.float32)

    # One-time param prep (cached outside the hot path). Use
    # matmul_dtype=jnp.bfloat16 here for large num_classes.
    params = prepare_dls_params(w1, w2, matmul_dtype=jnp.float32)

    out = dls_block_forward(x, y, params, factor=factor)
    out = jax.block_until_ready(out)

    ref = dls_block_reference(x, y, w1, b1, w2, b2, factor=factor)

    assert out.shape == (B, C)
    assert jnp.allclose(out, ref, atol=1e-4, rtol=1e-4), "mismatch vs reference"
    # The module's runtime assert: argmax(out) == argmax(y)  (checked host-side)
    assert bool(jnp.all(jnp.argmax(out, axis=1) == jnp.argmax(y, axis=1)))

    print("KERNEL_OK")
</pallas_src>

<mosaic_0001>
module attributes {stable_mosaic.version = 11 : i64} {
  func.func @kernel(%arg0: memref<8x128xf32, #tpu.memory_space<vmem>>, %arg1: memref<8x128xf32, #tpu.memory_space<vmem>>, %arg2: memref<128x128xf32, #tpu.memory_space<vmem>>, %arg3: memref<128x128xf32, #tpu.memory_space<any>>, %arg4: memref<8x128xf32, #tpu.memory_space<vmem>>, %arg5: memref<128x128xf32, #tpu.memory_space<vmem>>, %arg6: memref<!tpu.dma_semaphore, #tpu.memory_space<semaphore_mem>>) attributes {dimension_semantics = [], scalar_prefetch = 0 : i64, scratch_operands = 2 : i64, tpu.core_type = #tpu.core_type<tc>} {
    tpu.enqueue_dma source(%arg3 : memref<128x128xf32, #tpu.memory_space<any>>) target(%arg5 : memref<128x128xf32, #tpu.memory_space<vmem>>) target_semaphore(%arg6 : memref<!tpu.dma_semaphore, #tpu.memory_space<semaphore_mem>>)
    %c0 = arith.constant 0 : index
    %c0_0 = arith.constant 0 : index
    %0 = vector.load %arg0[%c0, %c0_0] : memref<8x128xf32, #tpu.memory_space<vmem>>, vector<8x128xf32>
    %c0_1 = arith.constant 0 : index
    %c0_2 = arith.constant 0 : index
    %1 = vector.load %arg1[%c0_1, %c0_2] : memref<8x128xf32, #tpu.memory_space<vmem>>, vector<8x128xf32>
    %2 = tpu.iota {dimensions = array<i32: 1>} : vector<1x128xi32>
    %c16_i32 = arith.constant 16 : i32
    %3 = vector.broadcast %c16_i32 : i32 to vector<1x128xi32>
    %4 = arith.cmpi slt, %2, %3 : vector<1x128xi32>
    %cst = arith.constant 0.000000e+00 : f32
    %5 = vector.broadcast %cst : f32 to vector<8x128xf32>
    %6 = arith.cmpf one, %1, %5 : vector<8x128xf32>
    %c0_3 = arith.constant 0 : index
    %c0_4 = arith.constant 0 : index
    %7 = vector.load %arg2[%c0_3, %c0_4] : memref<128x128xf32, #tpu.memory_space<vmem>>, vector<128x128xf32>
    %cst_5 = arith.constant dense<0.000000e+00> : vector<8x128xf32>
    %8 = tpu.matmul %0, %7, %cst_5 {dimension_numbers = #tpu.dot_dimension_numbers<[1], [0], [0], [1], [0, 0, 1, 1], [], []>} : vector<8x128xf32>, vector<128x128xf32>, vector<8x128xf32> -> vector<8x128xf32>
    %cst_6 = arith.constant dense<0.000000e+00> : vector<128xf32>
    %9 = vector.multi_reduction <add>, %8, %cst_6 [0] : vector<8x128xf32> to vector<128xf32>
    %10 = vector.shape_cast %9 : vector<128xf32> to vector<1x128xf32>
    %cst_7 = arith.constant 8.000000e+00 : f32
    %11 = vector.broadcast %cst_7 : f32 to vector<1x128xf32>
    %12 = arith.divf %10, %11 : vector<1x128xf32>
    %13 = vector.broadcast %12 : vector<1x128xf32> to vector<8x128xf32>
    %14 = arith.subf %8, %13 : vector<8x128xf32>
    %15 = arith.mulf %14, %14 : vector<8x128xf32>
    %cst_8 = arith.constant dense<0.000000e+00> : vector<128xf32>
    %16 = vector.multi_reduction <add>, %15, %cst_8 [0] : vector<8x128xf32> to vector<128xf32>
    %17 = vector.shape_cast %16 : vector<128xf32> to vector<1x128xf32>
    %cst_9 = arith.constant 8.000000e+00 : f32
    %18 = vector.broadcast %cst_9 : f32 to vector<1x128xf32>
    %19 = arith.divf %17, %18 : vector<1x128xf32>
    %20 = vector.broadcast %12 : vector<1x128xf32> to vector<8x128xf32>
    %21 = arith.subf %8, %20 : vector<8x128xf32>
    %cst_10 = arith.constant 9.99999974E-6 : f32
    %22 = vector.broadcast %cst_10 : f32 to vector<1x128xf32>
    %23 = arith.addf %19, %22 : vector<1x128xf32>
    %24 = math.rsqrt %23 : vector<1x128xf32>
    %25 = vector.broadcast %24 : vector<1x128xf32> to vector<8x128xf32>
    %26 = arith.mulf %21, %25 : vector<8x128xf32>
    %cst_11 = arith.constant 0.000000e+00 : f32
    %27 = vector.shape_cast %4 : vector<1x128xi1> to vector<1x128xi1>
    %28 = vector.broadcast %27 : vector<1x128xi1> to vector<8x128xi1>
    %29 = vector.broadcast %cst_11 : f32 to vector<8x128xf32>
    %30 = arith.select %28, %26, %29 : vector<8x128xi1>, vector<8x128xf32>
    %31 = math.absf %30 : vector<8x128xf32>
    %cst_12 = arith.constant dense<0xFF800000> : vector<8xf32>
    %32 = vector.multi_reduction <maximumf>, %31, %cst_12 [1] : vector<8x128xf32> to vector<8xf32>
    %33 = vector.shape_cast %32 : vector<8xf32> to vector<8x1xf32>
    %cst_13 = arith.constant 3.000000e+00 : f32
    %34 = vector.broadcast %cst_13 : f32 to vector<8x1xf32>
    %35 = arith.mulf %33, %34 : vector<8x1xf32>
    %36 = vector.shape_cast %35 : vector<8x1xf32> to vector<8x1xf32>
    %37 = vector.broadcast %36 : vector<8x1xf32> to vector<8x128xf32>
    %38 = arith.select %6, %37, %30 : vector<8x128xi1>, vector<8x128xf32>
    tpu.wait_dma2 semaphore(%arg6 : memref<!tpu.dma_semaphore, #tpu.memory_space<semaphore_mem>>) src(%arg3 : memref<128x128xf32, #tpu.memory_space<any>>) dst(%arg5 : memref<128x128xf32, #tpu.memory_space<vmem>>)
    %c0_14 = arith.constant 0 : index
    %c0_15 = arith.constant 0 : index
    %39 = vector.load %arg5[%c0_14, %c0_15] : memref<128x128xf32, #tpu.memory_space<vmem>>, vector<128x128xf32>
    %cst_16 = arith.constant dense<0.000000e+00> : vector<8x128xf32>
    %40 = tpu.matmul %38, %39, %cst_16 {dimension_numbers = #tpu.dot_dimension_numbers<[1], [0], [0], [1], [0, 0, 1, 1], [], []>} : vector<8x128xf32>, vector<128x128xf32>, vector<8x128xf32> -> vector<8x128xf32>
    %cst_17 = arith.constant dense<0.000000e+00> : vector<128xf32>
    %41 = vector.multi_reduction <add>, %40, %cst_17 [0] : vector<8x128xf32> to vector<128xf32>
    %42 = vector.shape_cast %41 : vector<128xf32> to vector<1x128xf32>
    %cst_18 = arith.constant 8.000000e+00 : f32
    %43 = vector.broadcast %cst_18 : f32 to vector<1x128xf32>
    %44 = arith.divf %42, %43 : vector<1x128xf32>
    %45 = vector.broadcast %44 : vector<1x128xf32> to vector<8x128xf32>
    %46 = arith.subf %40, %45 : vector<8x128xf32>
    %47 = arith.mulf %46, %46 : vector<8x128xf32>
    %cst_19 = arith.constant dense<0.000000e+00> : vector<128xf32>
    %48 = vector.multi_reduction <add>, %47, %cst_19 [0] : vector<8x128xf32> to vector<128xf32>
    %49 = vector.shape_cast %48 : vector<128xf32> to vector<1x128xf32>
    %cst_20 = arith.constant 8.000000e+00 : f32
    %50 = vector.broadcast %cst_20 : f32 to vector<1x128xf32>
    %51 = arith.divf %49, %50 : vector<1x128xf32>
    %52 = vector.broadcast %44 : vector<1x128xf32> to vector<8x128xf32>
    %53 = arith.subf %40, %52 : vector<8x128xf32>
    %cst_21 = arith.constant 9.99999974E-6 : f32
    %54 = vector.broadcast %cst_21 : f32 to vector<1x128xf32>
    %55 = arith.addf %51, %54 : vector<1x128xf32>
    %56 = math.rsqrt %55 : vector<1x128xf32>
    %57 = vector.broadcast %56 : vector<1x128xf32> to vector<8x128xf32>
    %58 = arith.mulf %53, %57 : vector<8x128xf32>
    %cst_22 = arith.constant 0.000000e+00 : f32
    %59 = vector.shape_cast %4 : vector<1x128xi1> to vector<1x128xi1>
    %60 = vector.broadcast %59 : vector<1x128xi1> to vector<8x128xi1>
    %61 = vector.broadcast %cst_22 : f32 to vector<8x128xf32>
    %62 = arith.select %60, %58, %61 : vector<8x128xi1>, vector<8x128xf32>
    %63 = math.absf %62 : vector<8x128xf32>
    %cst_23 = arith.constant dense<0xFF800000> : vector<8xf32>
    %64 = vector.multi_reduction <maximumf>, %63, %cst_23 [1] : vector<8x128xf32> to vector<8xf32>
    %65 = vector.shape_cast %64 : vector<8xf32> to vector<8x1xf32>
    %cst_24 = arith.constant 3.000000e+00 : f32
    %66 = vector.broadcast %cst_24 : f32 to vector<8x1xf32>
    %67 = arith.mulf %65, %66 : vector<8x1xf32>
    %68 = vector.shape_cast %67 : vector<8x1xf32> to vector<8x1xf32>
    %69 = vector.broadcast %68 : vector<8x1xf32> to vector<8x128xf32>
    %70 = arith.select %6, %69, %62 : vector<8x128xi1>, vector<8x128xf32>
    %c0_25 = arith.constant 0 : index
    %c0_26 = arith.constant 0 : index
    %71 = vector.load %arg4[%c0_25, %c0_26] : memref<8x128xf32, #tpu.memory_space<vmem>>, vector<8x128xf32>
    tpu.vector_store %arg4[%c0_25, %c0_26], %70 {strides = array<i32>} : memref<8x128xf32, #tpu.memory_space<vmem>>, vector<8x128xf32>,
    return
  }
}

</mosaic_0001>

<llo_original>
// kernel: _dls_forward.1
$region0: #{_dls_forward.1}
  #allocation0 [shape = 'u32[]', space=smem, size = 0x4, offset = 0x4, fixed_abs, tag = 'smem constant byte address 0x4 - core index']
  #allocation1 [shape = 'u32[72,128]{1,0:T(1,128)}', space=vmem, size = 0x9000, scoped, tag = 'internal scratch']
  #allocation2 [shape = 'f32[128,128]{1,0:T(8,128)}', space=vmem, size = 0x10000, scoped, tag = 'scratch operand']
  #allocation3 [shape = 's32[1]{0}', space=sflag, size = 0x4, scoped, tag = 'scratch operand']
  #allocation8 [shape = 's32[]', space=sflag, size = 0x4, offset = 0, fixed_abs, tag = 'sflag constant byte address 0x0 - dummy sync flag']
  #allocation9 [shape = 's32[]', space=sflag, size = 0x4, offset = 0, fixed_abs, tag = 'sflag constant byte address 0x0 - dummy sync flag']
  #allocation10 [shape = 'u32[]', space=smem, size = 0x4, offset = 0x44, fixed_abs, tag = 'smem constant byte address 0x44 - assertion arg 0']
  #allocation11 [shape = 'u32[]', space=smem, size = 0x4, offset = 0x48, fixed_abs, tag = 'smem constant byte address 0x48 - assertion arg 1']
  %s0 = inlined_call_operand.vmem [shape: f32[8,128], index: 0, kind: input, shape index: {}]
  %s1 = inlined_call_operand.vmem [shape: f32[8,128], index: 1, kind: input, shape index: {}]
  %s2 = inlined_call_operand.hbm [shape: f32[128,128], index: 2, kind: input, shape index: {}]
  %s3 = inlined_call_operand.hbm [shape: f32[128,128], index: 3, kind: input, shape index: {}]
  %s4 = inlined_call_operand.hbm [shape: f32[8,128], index: 4, kind: output, shape index: {}]
  %s5 = sld [smem:[#allocation0]]
  $region30: #{_dls_forward.1} parent=0
    _
  %s7 = ssub.s32 1, %s5
  %s8 = scalar_select 0, %s7, %s5
  $region1: #{_dls_forward.1} parent=0
    #allocation4 [shape = 'u8[65536]{0}', space=vmem, size = 0x10000, scoped, tag = 'input window, operand 2, single buffered']
    #allocation5 [shape = 's32[1]{0}', space=sflag, size = 0x4, scoped, tag = 'scoped memory for _dls_forward.1']
    #allocation6 [shape = 's32[1]{0}', space=sflag, size = 0x4, scoped, tag = 'scoped memory for _dls_forward.1']
    #allocation7 [shape = 'u8[4096]{0}', space=vmem, size = 0x1000, scoped, tag = 'output window, operand 0, single buffered']
    %9 = vsyncpa [#allocation5], 0
    %10 = vsyncpa [#allocation6], 0
    // Predicated region
    $region2: #{_dls_forward.1} parent=1 // pred_check
      _
    $region3: #{_dls_forward.1} parent=1 // pred_check_branch
      %12 = sbr.rel (0) target = $region5
    $region4: #{_dls_forward.1} parent=1 // pred_region
      _
    $region5: #{_dls_forward.1} parent=1 // pred_fallthru
      _
    // Predicated region
    $region6: #{_dls_forward.1} parent=1 // pred_check
      _
    $region7: #{_dls_forward.1} parent=1 // pred_check_branch
      %14 = sbr.rel (0) target = $region9
    $region8: #{_dls_forward.1} parent=1 // pred_region
      _
    $region9: #{_dls_forward.1} parent=1 // pred_fallthru
      _
    // Predicated region
    $region10: #{_dls_forward.1} parent=1 // pred_check
      _
    $region11: #{_dls_forward.1} parent=1 // pred_check_branch
      %16 = sbr.rel (0) target = $region13
    $region12: #{_dls_forward.1} parent=1 // pred_region
      %18 = vsyncadd [#allocation5], 0
      %s19 = sshll.u32 %s2, 4
      %s20 = int_to_ptr.hbm [resolvable:$true] %s19
      %s21 = sshll.u32 [#allocation4], 4
      %s22 = int_to_ptr.vmem [resolvable:$true] %s21
      %27 = dma.hbm_to_vmem [thread:$0]  %s20, 2048, %s22, [#allocation5], 128, 128, 8
    $region13: #{_dls_forward.1} parent=1 // pred_fallthru
      _
    // Predicated region
    $region14: #{_dls_forward.1} parent=1 // pred_check
      _
    $region15: #{_dls_forward.1} parent=1 // pred_check_branch
      %29 = sbr.rel (0) target = $region17
    $region16: #{_dls_forward.1} parent=1 // pred_region
      %31 = dma.done [#allocation5], 2048
    $region17: #{_dls_forward.1} parent=1 // pred_fallthru
      _
    // Predicated region
    $region18: #{_dls_forward.1} parent=1 // pred_check
      _
    $region19: #{_dls_forward.1} parent=1 // pred_check_branch
      %33 = sbr.rel target = $region21
    $region20: #{_dls_forward.1} parent=1 // pred_region
      %34 = sst [smem:[#allocation10]] [#allocation9]
      %35 = sst [smem:[#allocation11]] [#allocation8]
    $region21: #{_dls_forward.1} parent=1 // pred_fallthru
      _
    %37 = shalt.err (0)
    %s39 = sshll.u32 %s3, 4
    %s40 = int_to_ptr.hbm [resolvable:$true] %s39
    %s41 = sshll.u32 [#allocation2], 4
    %s42 = int_to_ptr.vmem [resolvable:$true] %s41
    %44 = dma.hbm_to_vmem [thread:$0]  %s40, 2048, %s42, [#allocation3]
    %v45 = vld [vmem:[%s0] sm:$0xff]
    %v46 = vld [vmem:[%s1] sm:$0xff]
    %v47 = vlaneseq
    %v48 = vand.u32 %v47, 127
    %vm49 = vcmp.lt.s32.totalorder %v48, 16
    %vm50 = vcmp.ne.f32.partialorder %v46, 0.0
    %v51 = vld [vmem:[#allocation4] sm:$0xff]
    %v52 = vld [vmem:[#allocation4 + $0x8] sm:$0xff]
    %v53 = vld [vmem:[#allocation4 + $0x10] sm:$0xff]
    %v54 = vld [vmem:[#allocation4 + $0x18] sm:$0xff]
    %v55 = vld [vmem:[#allocation4 + $0x20] sm:$0xff]
    %v56 = vld [vmem:[#allocation4 + $0x28] sm:$0xff]
    %v57 = vld [vmem:[#allocation4 + $0x30] sm:$0xff]
    %v58 = vld [vmem:[#allocation4 + $0x38] sm:$0xff]
    %v59 = vld [vmem:[#allocation4 + $0x40] sm:$0xff]
    %v60 = vld [vmem:[#allocation4 + $0x48] sm:$0xff]
    %v61 = vld [vmem:[#allocation4 + $0x50] sm:$0xff]
    %v62 = vld [vmem:[#allocation4 + $0x58] sm:$0xff]
    %v63 = vld [vmem:[#allocation4 + $0x60] sm:$0xff]
    %v64 = vld [vmem:[#allocation4 + $0x68] sm:$0xff]
    %v65 = vld [vmem:[#allocation4 + $0x70] sm:$0xff]
    %v66 = vld [vmem:[#allocation4 + $0x78] sm:$0xff]
    %67 = vmatpush.msra.mxu0 %v66
    %68 = vmatpush.msra.mxu0 %v65
    %69 = vmatpush.msra.mxu0 %v64
    %70 = vmatpush.msra.mxu0 %v63
    %71 = vmatpush.msra.mxu0 %v62
    %72 = vmatpush.msra.mxu0 %v61
    %73 = vmatpush.msra.mxu0 %v60
    %74 = vmatpush.msra.mxu0 %v59
    %75 = vmatpush.msra.mxu0 %v58
    %76 = vmatpush.msra.mxu0 %v57
    %77 = vmatpush.msra.mxu0 %v56
    %78 = vmatpush.msra.mxu0 %v55
    %79 = vmatpush.msra.mxu0 %v54
    %80 = vmatpush.msra.mxu0 %v53
    %81 = vmatpush.msra.mxu0 %v52
    %82 = vmatpush.msra.mxu0 %v51
    %83 = vmatmul.f32.gmra.mxu0 %v45
    %v84 = vpop.f32.mrf.mxu0
    %v85 = vadd.f32 0.0, %v84
    %86 = vdwg.mxu0
    %v87 = vrot.slane %v85, 4
    %v88 = vadd.f32 %v85, %v87
    %v89 = vrot.slane %v88, 2
    %v90 = vadd.f32 %v88, %v89
    %v91 = vrot.slane %v90, 1
    %v92 = vadd.f32 %v90, %v91
    %v93 = vrcp.pop 8.0
    %v94 = vmul.f32 8.0, %v93
    %v95 = vsub.f32 1.0, %v94
    %v96 = vmul.f32 %v93, %v95
    %v97 = vadd.f32 %v93, %v96
    %vm98 = vweird.f32 %v93
    %v99 = vsel %vm98, %v93, %v97
    %v100 = vmul.f32 %v92, %v99
    %v101 = vsub.f32 %v85, %v100
    %v102 = vmul.f32 %v101, %v101
    %v103 = vrot.slane %v102, 4
    %v104 = vadd.f32 %v102, %v103
    %v105 = vrot.slane %v104, 2
    %v106 = vadd.f32 %v104, %v105
    %v107 = vrot.slane %v106, 1
    %v108 = vadd.f32 %v106, %v107
    %v109 = vmul.f32 %v108, %v99
    %v110 = vadd.f32 %v109, 1e-05
    %v111 = vrsqrt.pop %v110
    %v112 = vmul.f32 %v111, %v110
    %v113 = vmul.f32 %v112, %v111
    %v114 = vmul.f32 0.5, %v113
    %v115 = vsub.f32 1.5, %v114
    %v116 = vmul.f32 %v111, %v115
    %vm117 = vweird.f32 %v110
    %vm118 = vweird.f32 %v111
    %vm119 = vmor %vm117, %vm118
    %v120 = vsel %vm119, %v111, %v116
    %v121 = vmul.f32 %v101, %v120
    %v122 = vsel %vm49, 1, 0
    %vm123 = vcmp.eq.s32.totalorder %v122, 1
    %v124 = vsel %vm123, %v121, 0.0
    %v125 = vand.u32 2147483647, %v124
    %126 = vmax.xlane.f32.xlu0 %v125
    %v127 = vpop.xlane.xlu0 %126
    %v128 = vmul.f32 %v127, 3.0
    %v129 = vsel %vm50, %v128, %v124
    %s130 = smul.u32 128, 1
    %s131 = sshll.u32 %s130, 4
    %132 = dma.done [#allocation3], %s131
    %v133 = vld [vmem:[#allocation2] sm:$0xff]
    %v134 = vld [vmem:[#allocation2 + $0x8] sm:$0xff]
    %v135 = vld [vmem:[#allocation2 + $0x10] sm:$0xff]
    %v136 = vld [vmem:[#allocation2 + $0x18] sm:$0xff]
    %v137 = vld [vmem:[#allocation2 + $0x20] sm:$0xff]
    %v138 = vld [vmem:[#allocation2 + $0x28] sm:$0xff]
    %v139 = vld [vmem:[#allocation2 + $0x30] sm:$0xff]
    %v140 = vld [vmem:[#allocation2 + $0x38] sm:$0xff]
    %v141 = vld [vmem:[#allocation2 + $0x40] sm:$0xff]
    %v142 = vld [vmem:[#allocation2 + $0x48] sm:$0xff]
    %v143 = vld [vmem:[#allocation2 + $0x50] sm:$0xff]
    %v144 = vld [vmem:[#allocation2 + $0x58] sm:$0xff]
    %v145 = vld [vmem:[#allocation2 + $0x60] sm:$0xff]
    %v146 = vld [vmem:[#allocation2 + $0x68] sm:$0xff]
    %v147 = vld [vmem:[#allocation2 + $0x70] sm:$0xff]
    %v148 = vld [vmem:[#allocation2 + $0x78] sm:$0xff]
    %149 = vmatpush.msra.mxu0 %v148
    %150 = vmatpush.msra.mxu0 %v147
    %151 = vmatpush.msra.mxu0 %v146
    %152 = vmatpush.msra.mxu0 %v145
    %153 = vmatpush.msra.mxu0 %v144
    %154 = vmatpush.msra.mxu0 %v143
    %155 = vmatpush.msra.mxu0 %v142
    %156 = vmatpush.msra.mxu0 %v141
    %157 = vmatpush.msra.mxu0 %v140
    %158 = vmatpush.msra.mxu0 %v139
    %159 = vmatpush.msra.mxu0 %v138
    %160 = vmatpush.msra.mxu0 %v137
    %161 = vmatpush.msra.mxu0 %v136
    %162 = vmatpush.msra.mxu0 %v135
    %163 = vmatpush.msra.mxu0 %v134
    %164 = vmatpush.msra.mxu0 %v133
    %165 = vmatmul.f32.gmra.mxu0 %v129
    %v166 = vpop.f32.mrf.mxu0
    %v167 = vadd.f32 0.0, %v166
    %168 = vdwg.mxu0
    %v169 = vrot.slane %v167, 4
    %v170 = vadd.f32 %v167, %v169
    %v171 = vrot.slane %v170, 2
    %v172 = vadd.f32 %v170, %v171
    %v173 = vrot.slane %v172, 1
    %v174 = vadd.f32 %v172, %v173
    %v175 = vmul.f32 %v174, %v99
    %v176 = vsub.f32 %v167, %v175
    %v177 = vmul.f32 %v176, %v176
    %v178 = vrot.slane %v177, 4
    %v179 = vadd.f32 %v177, %v178
    %v180 = vrot.slane %v179, 2
    %v181 = vadd.f32 %v179, %v180
    %v182 = vrot.slane %v181, 1
    %v183 = vadd.f32 %v181, %v182
    %v184 = vmul.f32 %v183, %v99
    %v185 = vadd.f32 %v184, 1e-05
    %v186 = vrsqrt.pop %v185
    %v187 = vmul.f32 %v186, %v185
    %v188 = vmul.f32 %v187, %v186
    %v189 = vmul.f32 0.5, %v188
    %v190 = vsub.f32 1.5, %v189
    %v191 = vmul.f32 %v186, %v190
    %vm192 = vweird.f32 %v185
    %vm193 = vweird.f32 %v186
    %vm194 = vmor %vm192, %vm193
    %v195 = vsel %vm194, %v186, %v191
    %v196 = vmul.f32 %v176, %v195
    %v197 = vsel %vm123, %v196, 0.0
    %v198 = vand.u32 2147483647, %v197
    %199 = vmax.xlane.f32.xlu0 %v198
    %v200 = vpop.xlane.xlu0 %199
    %v201 = vmul.f32 %v200, 3.0
    %v202 = vsel %vm50, %v201, %v197
    %203 = vst [vmem:[#allocation7] sm:$0xff] %v202
    // Predicated region
    $region22: #{_dls_forward.1} parent=1 // pred_check
      _
    $region23: #{_dls_forward.1} parent=1 // pred_check_branch
      %205 = sbr.rel (0) target = $region25
    $region24: #{_dls_forward.1} parent=1 // pred_region
      %207 = vsyncadd [#allocation6], 0
      %s209 = sshll.u32 [#allocation7], 4
      %s210 = int_to_ptr.vmem [resolvable:$true] %s209
      %s211 = sshll.u32 %s4, 4
      %s212 = int_to_ptr.hbm [resolvable:$true] %s211
      %214 = dma.vmem_to_hbm [thread:$0]  %s210, 128, %s212, [#allocation6]
    $region25: #{_dls_forward.1} parent=1 // pred_fallthru
      _
    // Predicated region
    $region26: #{_dls_forward.1} parent=1 // pred_check
      _
    $region27: #{_dls_forward.1} parent=1 // pred_check_branch
      %216 = sbr.rel (0) target = $region29
    $region28: #{_dls_forward.1} parent=1 // pred_region
      %218 = dma.done [#allocation6], 128
    $region29: #{_dls_forward.1} parent=1 // pred_fallthru
      _
    %219 = vsyncpa [#allocation5], 1
    %220 = vsyncpa [#allocation6], 1
  %221 = vsyncmov [#allocation3]
  %s222 = vpop.sfrf %221
  %p223 = scmp.eq.s32.totalorder %s222, 0
  %p224 = pneg %p223
  %226 = shalt.err (%p224)

</llo_original>
